<compile_context>
chip_gen: v6e
topology: v6e:2x2x1
jax: 0.10.0
libtpu: 0.0.40
codegen_flags: <defaults>
</compile_context>

<pallas_src>
import math

import jax
import jax.numpy as jnp
from jax.experimental import pallas as pl
from jax.experimental.pallas import tpu as pltpu


# ---------------------------------------------------------------------------
# Path 1: zero-traffic "view" kernel (output aliases input; no DMA at all).
# ---------------------------------------------------------------------------
def _touch_kernel(x_ref, o_ref):
    # No data movement: the output buffer aliases the input buffer.  `touch`
    # pins the refs so the aliased output materializes after this call.
    if hasattr(pltpu, "touch"):          # trace-time Python check
        pltpu.touch(x_ref)
        pltpu.touch(o_ref)


def _pallas_view_noop(flat: jax.Array) -> jax.Array:
    return pl.pallas_call(
        _touch_kernel,
        out_shape=jax.ShapeDtypeStruct(flat.shape, flat.dtype),
        in_specs=[pl.BlockSpec(memory_space=pl.ANY)],
        out_specs=pl.BlockSpec(memory_space=pl.ANY),
        input_output_aliases={0: 0},
        compiler_params=pltpu.CompilerParams(has_side_effects=True),
    )(flat)


# ---------------------------------------------------------------------------
# Path 2: roofline-tuned identity copy (used only if path 1 is unavailable).
# ---------------------------------------------------------------------------
def _copy_kernel(x_ref, o_ref):
    o_ref[...] = x_ref[...]


def _pallas_copy_lane_dense(flat: jax.Array) -> jax.Array:
    n = int(flat.shape[0])
    itemsize = jnp.dtype(flat.dtype).itemsize

    # Lane-dense slab: widest lane count (multiple of 128) that divides n, so
    # stores are unmasked full-width `vst` instead of masked partial stores.
    lane = next((c for c in (2048, 1024, 512, 256, 128) if n % c == 0), None)
    if lane is None:
        # Ragged element count (rare for real tensors): one full-extent block.
        # TODO(synk): pad + tile ragged totals if they ever show up hot.
        rows, lane, tb = 1, n, 1
    else:
        rows = n // lane
        # Dtype-aware sublane alignment: f32 -> 8 rows, bf16 -> 16, int8 -> 32.
        sub = max(8, 32 // itemsize)
        if rows < sub:
            tb = rows
        else:
            target_bytes = 2 * 1024 * 1024          # ~2 MiB per block
            tb = (target_bytes // (lane * itemsize)) // sub * sub
            tb = max(sub, min(tb, (rows // sub) * sub))

    x2d = flat.reshape(rows, lane)
    y2d = pl.pallas_call(
        _copy_kernel,
        out_shape=jax.ShapeDtypeStruct((rows, lane), flat.dtype),
        grid_spec=pltpu.PrefetchScalarGridSpec(
            num_scalar_prefetch=0,
            grid=(pl.cdiv(rows, tb),),
            in_specs=[pl.BlockSpec((tb, lane), lambda i: (i, 0))],
            out_specs=pl.BlockSpec((tb, lane), lambda i: (i, 0)),
        ),
        compiler_params=pltpu.CompilerParams(
            dimension_semantics=("parallel",),      # shard across v7x's 2 TCs
            vmem_limit_bytes=32 * 1024 * 1024,      # raise v5e's 16 MiB default
        ),
        cost_estimate=pl.CostEstimate(
            flops=0, transcendentals=0, bytes_accessed=2 * n * itemsize),
    )(x2d)
    return y2d.reshape(n)


# ---------------------------------------------------------------------------
# Dispatcher: prefer the zero-copy aliased kernel; probe it once.
# ---------------------------------------------------------------------------
_NOOP_PATH = None   # lazily probed: True if the aliased no-op kernel works


def _pallas_identity(flat: jax.Array) -> jax.Array:
    """Identity on a flat 1-D array, routed through a Pallas kernel."""
    global _NOOP_PATH
    if _NOOP_PATH is None:
        try:
            out = jax.block_until_ready(_pallas_view_noop(flat))
            _NOOP_PATH = True
            return out
        except Exception:
            _NOOP_PATH = False
    if _NOOP_PATH:
        return _pallas_view_noop(flat)
    return _pallas_copy_lane_dense(flat)


class View:
    """JAX/Pallas equivalent of the PyTorch View module."""

    def __init__(self, shape):
        self.shape = tuple(shape)

    def __repr__(self):
        return f"View{self.shape}"

    def _resolve_shape(self, last: int) -> tuple:
        shape = list(self.shape)
        if -1 in shape:
            i = shape.index(-1)
            rest = math.prod(shape[:i] + shape[i + 1:])
            shape[i] = last // rest
        assert math.prod(shape) == last, (
            f"View{self.shape} incompatible with last dim {last}")
        return tuple(shape)

    def __call__(self, x: jax.Array) -> jax.Array:
        batch_dims = x.shape[:-1]
        tail = self._resolve_shape(x.shape[-1])
        flat = x.reshape(-1)                   # metadata only
        y = _pallas_identity(flat)             # Pallas hot path (0x/1x traffic)
        return y.reshape(*batch_dims, *tail)   # metadata only


if __name__ == "__main__":
    key = jax.random.PRNGKey(0)
    # Small shapes consistent with the module: batch dims (2, 4), hidden = 32,
    # viewed as (8, 4).
    x = jax.random.normal(key, (2, 4, 32), dtype=jnp.float32)

    view = View((8, 4))
    out = jax.block_until_ready(view(x))

    # Verify against plain JAX reshape semantics (PyTorch .view is row-major
    # contiguous reshape, same as jnp.reshape).
    ref = x.reshape(2, 4, 8, 4)
    assert out.shape == (2, 4, 8, 4), out.shape
    assert out.dtype == x.dtype
    assert jnp.array_equal(out, ref), "mismatch vs reference reshape"

    # Also exercise the roofline-tuned copy path explicitly (bit-exact).
    flat = x.reshape(-1)
    y = jax.block_until_ready(_pallas_copy_lane_dense(flat))
    assert jnp.array_equal(y, flat), "copy-path mismatch"

    print("KERNEL_OK")
</pallas_src>

<mosaic_0001>
module attributes {stable_mosaic.version = 11 : i64} {
  func.func @_copy_kernel(%arg0: i32, %arg1: memref<1x256xf32, #tpu.memory_space<vmem>>, %arg2: memref<1x256xf32, #tpu.memory_space<vmem>>) attributes {dimension_semantics = [#tpu.dimension_semantics<parallel>], iteration_bounds = array<i64: 1>, scalar_prefetch = 0 : i64, scratch_operands = 0 : i64, tpu.core_type = #tpu.core_type<tc>, window_params = [{transform_indices = @transform_0, window_bounds = array<i64: 1, 256>}, {transform_indices = @transform_1, window_bounds = array<i64: 1, 256>}]} {
    %c0 = arith.constant 0 : index
    %c0_0 = arith.constant 0 : index
    %0 = vector.load %arg1[%c0, %c0_0] : memref<1x256xf32, #tpu.memory_space<vmem>>, vector<1x256xf32>
    %c0_1 = arith.constant 0 : index
    %c0_2 = arith.constant 0 : index
    %1 = vector.load %arg2[%c0_1, %c0_2] : memref<1x256xf32, #tpu.memory_space<vmem>>, vector<1x256xf32>
    tpu.vector_store %arg2[%c0_1, %c0_2], %0 {strides = array<i32>} : memref<1x256xf32, #tpu.memory_space<vmem>>, vector<1x256xf32>,
    return
  }
  func.func @transform_0(%arg0: i32) -> (i32, i32) {
    %c0_i32 = arith.constant 0 : i32
    %c0_i32_0 = arith.constant 0 : i32
    return %arg0, %c0_i32 : i32, i32
  }
  func.func @transform_1(%arg0: i32) -> (i32, i32) {
    %c0_i32 = arith.constant 0 : i32
    %c0_i32_0 = arith.constant 0 : i32
    return %arg0, %c0_i32 : i32, i32
  }
}

</mosaic_0001>

<llo_original>
// kernel: tpu_custom_call.1
$region0: #{tpu_custom_call.1}
  #allocation0 [shape = 'u32[]', space=smem, size = 0x4, offset = 0x4, fixed_abs, tag = 'smem constant byte address 0x4 - core index']
  #allocation1 [shape = 'u32[144,128]{1,0:T(1,128)}', space=vmem, size = 0x12000, scoped, tag = 'internal scratch']
  %s0 = inlined_call_operand.hbm [shape: f32[1,256], index: 0, kind: input, shape index: {}]
  %s1 = inlined_call_operand.hbm [shape: f32[1,256], index: 1, kind: output, shape index: {}]
  %s2 = sld [smem:[#allocation0]]
  $region18: #{tpu_custom_call.1} parent=0
    _
  %s4 = ssub.s32 1, %s2
  %s5 = scalar_select 0, %s4, %s2
  $region1: #{tpu_custom_call.1} parent=0
    #allocation2 [shape = 'u8[1024]{0}', space=vmem, size = 0x400, scoped, tag = 'input window, operand 0, single buffered']
    #allocation3 [shape = 's32[1]{0}', space=sflag, size = 0x4, scoped, tag = 'scoped memory for tpu_custom_call.1']
    #allocation4 [shape = 's32[1]{0}', space=sflag, size = 0x4, scoped, tag = 'scoped memory for tpu_custom_call.1']
    #allocation5 [shape = 'u8[1024]{0}', space=vmem, size = 0x400, scoped, tag = 'output window, operand 0, single buffered']
    %6 = vsyncpa [#allocation3], 0
    %7 = vsyncpa [#allocation4], 0
    // Predicated region
    $region2: #{tpu_custom_call.1} parent=1 // pred_check
      _
    $region3: #{tpu_custom_call.1} parent=1 // pred_check_branch
      %9 = sbr.rel (0) target = $region5
    $region4: #{tpu_custom_call.1} parent=1 // pred_region
      %s11 = ssub.s32 32, 32
      %12 = vsyncadd [#allocation3], %s11
      %s14 = sshll.u32 [#allocation2], 4
      %s15 = int_to_ptr.vmem [resolvable:$true] %s14
      %17 = dma.hbm_to_vmem [thread:$0]  %s0, 32, %s15, [#allocation3]
    $region5: #{tpu_custom_call.1} parent=1 // pred_fallthru
      _
    // Predicated region
    $region6: #{tpu_custom_call.1} parent=1 // pred_check
      _
    $region7: #{tpu_custom_call.1} parent=1 // pred_check_branch
      %19 = sbr.rel (0) target = $region9
    $region8: #{tpu_custom_call.1} parent=1 // pred_region
      %20 = dma.done [#allocation3], 32
    $region9: #{tpu_custom_call.1} parent=1 // pred_fallthru
      _
    %v21 = vld [vmem:[#allocation2] sm:$0x3]
    %v22 = vlaneseq
    %vm23 = vcmp.ge.s32.totalorder %v22, 0
    %vm24 = vcmp.lt.s32.totalorder %v22, 256
    %vm25 = vmand %vm23, %vm24
    %26 = vst.msk [vmem:[#allocation5] sm:$0x3] %vm25, %v21
    // Predicated region
    $region10: #{tpu_custom_call.1} parent=1 // pred_check
      _
    $region11: #{tpu_custom_call.1} parent=1 // pred_check_branch
      %28 = sbr.rel (0) target = $region13
    $region12: #{tpu_custom_call.1} parent=1 // pred_region
      %s30 = ssub.s32 32, 32
      %31 = vsyncadd [#allocation4], %s30
      %s33 = sshll.u32 [#allocation5], 4
      %s34 = int_to_ptr.vmem [resolvable:$true] %s33
      %36 = dma.vmem_to_hbm [thread:$0]  %s34, 32, %s1, [#allocation4]
    $region13: #{tpu_custom_call.1} parent=1 // pred_fallthru
      _
    // Predicated region
    $region14: #{tpu_custom_call.1} parent=1 // pred_check
      _
    $region15: #{tpu_custom_call.1} parent=1 // pred_check_branch
      %38 = sbr.rel (0) target = $region17
    $region16: #{tpu_custom_call.1} parent=1 // pred_region
      %39 = dma.done [#allocation4], 32
    $region17: #{tpu_custom_call.1} parent=1 // pred_fallthru
      _
    %40 = vsyncpa [#allocation3], 1
    %41 = vsyncpa [#allocation4], 1

</llo_original>
